<compile_context>
chip_gen: v5e
topology: v5e:2x2
jax: 0.10.0
libtpu: 0.0.40
codegen_flags: <defaults>
</compile_context>

<pallas_src>
import functools

import jax
import jax.numpy as jnp
from jax import lax
from jax.experimental import pallas as pl
from jax.experimental.pallas import tpu as pltpu

F_IN = 42      # input features
HID = 64       # hidden width
ACT = 7        # action logits
BIAS = HID     # lane index carrying the folded-bias "ones" column (= 64)
KP = 72        # padded width (multiple of 8): 64 hidden + 1 bias lane + 7 pad


def net_kernel(x_ref, w_ref, out_ref, xp_ref, idx_ref, *, batch, num_actions):
    """x_ref:  (B, 42)    f32 raw input (no host-side padding).
       w_ref:  (4, 72, 72) f32 packed weights, biases folded via row 64.
       out_ref:(1,)       i32 in SMEM -- flattened argmax over the (B, 7) logits.
       xp_ref: (BP, 72)   f32 VMEM scratch -- padded input staging tile.
       idx_ref:(1, 1)     i32 VMEM scratch -- argmax scalar staging."""
    bp, kp = xp_ref.shape
    row = lax.broadcasted_iota(jnp.int32, (bp, kp), 0)
    col = lax.broadcasted_iota(jnp.int32, (bp, kp), 1)

    # --- assemble padded input tile in VMEM (replaces un-fused wrapper pad ops) ---
    xp_ref[...] = jnp.where(col == BIAS, jnp.float32(1.0), jnp.float32(0.0))
    xp_ref[0:batch, 0:F_IN] = x_ref[...]
    x = xp_ref[...]                                                 # (bp, kp)

    # --- MLP hot path: four MXU matmuls (K = N = 72), biases folded in ---
    h = jnp.maximum(jnp.dot(x, w_ref[0], preferred_element_type=jnp.float32), 0.0)
    h = jnp.maximum(jnp.dot(h, w_ref[1], preferred_element_type=jnp.float32), 0.0)
    h = jnp.maximum(jnp.dot(h, w_ref[2], preferred_element_type=jnp.float32), 0.0)
    logits = jnp.dot(h, w_ref[3], preferred_element_type=jnp.float32)   # (bp, kp)

    # --- mask: for i in range(7): if x[0, i] != 0: logits[0, i] = -1e10 ---
    mask0 = (x[0:1, :] != 0.0) & (row == 0) & (col < num_actions)
    logits = jnp.where(mask0, jnp.float32(-1e10), logits)

    # --- kill padding rows/cols before the global argmax ---
    valid = (row < batch) & (col < num_actions)
    logits = jnp.where(valid, logits, jnp.float32(-jnp.inf))

    # --- flattened global argmax, first occurrence (matches torch tie-breaking) ---
    max_val = jnp.max(logits, axis=(0, 1), keepdims=True)           # (1, 1)
    flat_idx = row * num_actions + col
    sentinel = jnp.int32(jnp.iinfo(jnp.int32).max)
    cand = jnp.where(logits == max_val, flat_idx, sentinel)
    idx_ref[...] = jnp.min(cand, axis=(0, 1), keepdims=True)        # (1, 1) i32
    out_ref[0] = idx_ref[0, 0]                                      # scalar SMEM store


def pack_weights(params):
    """Pack (w1,b1,...,w4,b4) into one (4, 72, 72) f32 slab with biases folded in.

    Per layer l: slab[l][:fan_in, :fan_out] = W_l, slab[l][64, :fan_out] = b_l,
    and slab[l][64, 64] = 1.0 for l < 3 so the ones-lane propagates through the
    ReLUs (relu(1) == 1). Everything else is zero."""
    w1, b1, w2, b2, w3, b3, w4, b4 = params
    slab = jnp.zeros((4, KP, KP), jnp.float32)
    for l, (w, b) in enumerate(((w1, b1), (w2, b2), (w3, b3), (w4, b4))):
        fan_in, fan_out = w.shape
        slab = slab.at[l, :fan_in, :fan_out].set(w)
        slab = slab.at[l, BIAS, :fan_out].set(b[0])
        if l < 3:
            slab = slab.at[l, BIAS, BIAS].set(1.0)
    return slab


def net_forward(x, w_slab):
    """x: (B, 42) float32 raw input. w_slab: packed (4,72,72) weights.
    Returns int32 scalar: flattened argmax over the (B, 7) logits."""
    B, F = x.shape
    assert F == F_IN, f"expected {F_IN} input features, got {F}"
    BP = max(8, ((B + 7) // 8) * 8)

    kernel = functools.partial(net_kernel, batch=B, num_actions=ACT)
    out = pl.pallas_call(
        kernel,
        out_shape=jax.ShapeDtypeStruct((1,), jnp.int32),
        in_specs=[
            pl.BlockSpec(memory_space=pltpu.MemorySpace.VMEM),   # raw x    (tiny DMA)
            pl.BlockSpec(memory_space=pltpu.MemorySpace.VMEM),   # w_slab   (~81 KiB DMA)
        ],
        out_specs=pl.BlockSpec(memory_space=pltpu.MemorySpace.SMEM),
        scratch_shapes=[
            pltpu.VMEM((BP, KP), jnp.float32),   # padded-input staging tile
            pltpu.VMEM((1, 1), jnp.int32),       # argmax scalar staging
        ],
    )(x, w_slab)
    return out[0]


def init_params(key):
    """Deterministic init mimicking nn.Linear default (uniform +/- 1/sqrt(fan_in)).
    Weights are returned already transposed to (in_features, out_features)."""
    dims = [(F_IN, HID), (HID, HID), (HID, HID), (HID, ACT)]
    params = []
    for i, (fan_in, fan_out) in enumerate(dims):
        kw, kb = jax.random.split(jax.random.fold_in(key, i))
        bound = 1.0 / (fan_in ** 0.5)
        w = jax.random.uniform(kw, (fan_in, fan_out), jnp.float32, -bound, bound)
        b = jax.random.uniform(kb, (1, fan_out), jnp.float32, -bound, bound)
        params += [w, b]
    return tuple(params)


def reference_forward(x, params):
    """Pure-JAX reference for validation (mirrors the torch forward)."""
    w1, b1, w2, b2, w3, b3, w4, b4 = params
    h = jnp.maximum(x @ w1 + b1, 0.0)
    h = jnp.maximum(h @ w2 + b2, 0.0)
    h = jnp.maximum(h @ w3 + b3, 0.0)
    logits = h @ w4 + b4
    mask_row0 = x[0, :ACT] != 0.0
    logits = logits.at[0, :ACT].set(jnp.where(mask_row0, -1e10, logits[0, :ACT]))
    return jnp.argmax(logits)          # flattened argmax, like torch


if __name__ == "__main__":
    key = jax.random.PRNGKey(0)
    k_params, k_x = jax.random.split(key)

    params = init_params(k_params)
    w_slab = pack_weights(params)      # pack once; reuse across calls

    B = 2
    x = jax.random.normal(k_x, (B, F_IN), jnp.float32)
    # Zero out a few of the first 7 features of row 0 so both mask branches are hit.
    x = x.at[0, 0:3].set(0.0)

    out = net_forward(x, w_slab)
    out = jax.block_until_ready(out)

    ref = int(reference_forward(x, params))
    got = int(out)
    assert got == ref, f"mismatch: kernel={got} ref={ref}"

    print("KERNEL_OK")
</pallas_src>

<mosaic_0001>
module attributes {stable_mosaic.version = 11 : i64} {
  func.func @net_kernel(%arg0: memref<2x42xf32, #tpu.memory_space<vmem>>, %arg1: memref<4x72x72xf32, #tpu.memory_space<vmem>>, %arg2: memref<1xi32, #tpu.memory_space<smem>>, %arg3: memref<8x72xf32, #tpu.memory_space<vmem>>, %arg4: memref<1x1xi32, #tpu.memory_space<vmem>>) attributes {dimension_semantics = [], scalar_prefetch = 0 : i64, scratch_operands = 2 : i64, tpu.core_type = #tpu.core_type<tc>} {
    %0 = tpu.iota {dimensions = array<i32: 0>} : vector<8x72xi32>
    %1 = tpu.iota {dimensions = array<i32: 1>} : vector<8x72xi32>
    %c64_i32 = arith.constant 64 : i32
    %2 = vector.broadcast %c64_i32 : i32 to vector<8x72xi32>
    %3 = arith.cmpi eq, %1, %2 : vector<8x72xi32>
    %cst = arith.constant 1.000000e+00 : f32
    %cst_0 = arith.constant 0.000000e+00 : f32
    %4 = vector.broadcast %cst : f32 to vector<8x72xf32>
    %5 = vector.broadcast %cst_0 : f32 to vector<8x72xf32>
    %6 = arith.select %3, %4, %5 : vector<8x72xi1>, vector<8x72xf32>
    %c0 = arith.constant 0 : index
    %c0_1 = arith.constant 0 : index
    %7 = vector.load %arg3[%c0, %c0_1] : memref<8x72xf32, #tpu.memory_space<vmem>>, vector<8x72xf32>
    tpu.vector_store %arg3[%c0, %c0_1], %6 {strides = array<i32>} : memref<8x72xf32, #tpu.memory_space<vmem>>, vector<8x72xf32>,
    %c0_2 = arith.constant 0 : index
    %c0_3 = arith.constant 0 : index
    %8 = vector.load %arg0[%c0_2, %c0_3] : memref<2x42xf32, #tpu.memory_space<vmem>>, vector<2x42xf32>
    %c0_4 = arith.constant 0 : index
    %c0_5 = arith.constant 0 : index
    %9 = vector.load %arg3[%c0_4, %c0_5] : memref<8x72xf32, #tpu.memory_space<vmem>>, vector<2x42xf32>
    tpu.vector_store %arg3[%c0_4, %c0_5], %8 {strides = array<i32>} : memref<8x72xf32, #tpu.memory_space<vmem>>, vector<2x42xf32>,
    %c0_6 = arith.constant 0 : index
    %c0_7 = arith.constant 0 : index
    %10 = vector.load %arg3[%c0_6, %c0_7] : memref<8x72xf32, #tpu.memory_space<vmem>>, vector<8x72xf32>
    %c0_8 = arith.constant 0 : index
    %c0_9 = arith.constant 0 : index
    %c0_10 = arith.constant 0 : index
    %11 = vector.load %arg1[%c0_8, %c0_9, %c0_10] : memref<4x72x72xf32, #tpu.memory_space<vmem>>, vector<1x72x72xf32>
    %12 = vector.shape_cast %11 : vector<1x72x72xf32> to vector<72x72xf32>
    %cst_11 = arith.constant dense<0.000000e+00> : vector<8x72xf32>
    %13 = tpu.matmul %10, %12, %cst_11 {dimension_numbers = #tpu.dot_dimension_numbers<[1], [0], [0], [1], [0, 0, 1, 1], [], []>} : vector<8x72xf32>, vector<72x72xf32>, vector<8x72xf32> -> vector<8x72xf32>
    %cst_12 = arith.constant 0.000000e+00 : f32
    %14 = vector.broadcast %cst_12 : f32 to vector<8x72xf32>
    %15 = arith.maximumf %13, %14 : vector<8x72xf32>
    %c1 = arith.constant 1 : index
    %c0_13 = arith.constant 0 : index
    %c0_14 = arith.constant 0 : index
    %16 = vector.load %arg1[%c1, %c0_13, %c0_14] : memref<4x72x72xf32, #tpu.memory_space<vmem>>, vector<1x72x72xf32>
    %17 = vector.shape_cast %16 : vector<1x72x72xf32> to vector<72x72xf32>
    %cst_15 = arith.constant dense<0.000000e+00> : vector<8x72xf32>
    %18 = tpu.matmul %15, %17, %cst_15 {dimension_numbers = #tpu.dot_dimension_numbers<[1], [0], [0], [1], [0, 0, 1, 1], [], []>} : vector<8x72xf32>, vector<72x72xf32>, vector<8x72xf32> -> vector<8x72xf32>
    %cst_16 = arith.constant 0.000000e+00 : f32
    %19 = vector.broadcast %cst_16 : f32 to vector<8x72xf32>
    %20 = arith.maximumf %18, %19 : vector<8x72xf32>
    %c2 = arith.constant 2 : index
    %c0_17 = arith.constant 0 : index
    %c0_18 = arith.constant 0 : index
    %21 = vector.load %arg1[%c2, %c0_17, %c0_18] : memref<4x72x72xf32, #tpu.memory_space<vmem>>, vector<1x72x72xf32>
    %22 = vector.shape_cast %21 : vector<1x72x72xf32> to vector<72x72xf32>
    %cst_19 = arith.constant dense<0.000000e+00> : vector<8x72xf32>
    %23 = tpu.matmul %20, %22, %cst_19 {dimension_numbers = #tpu.dot_dimension_numbers<[1], [0], [0], [1], [0, 0, 1, 1], [], []>} : vector<8x72xf32>, vector<72x72xf32>, vector<8x72xf32> -> vector<8x72xf32>
    %cst_20 = arith.constant 0.000000e+00 : f32
    %24 = vector.broadcast %cst_20 : f32 to vector<8x72xf32>
    %25 = arith.maximumf %23, %24 : vector<8x72xf32>
    %c3 = arith.constant 3 : index
    %c0_21 = arith.constant 0 : index
    %c0_22 = arith.constant 0 : index
    %26 = vector.load %arg1[%c3, %c0_21, %c0_22] : memref<4x72x72xf32, #tpu.memory_space<vmem>>, vector<1x72x72xf32>
    %27 = vector.shape_cast %26 : vector<1x72x72xf32> to vector<72x72xf32>
    %cst_23 = arith.constant dense<0.000000e+00> : vector<8x72xf32>
    %28 = tpu.matmul %25, %27, %cst_23 {dimension_numbers = #tpu.dot_dimension_numbers<[1], [0], [0], [1], [0, 0, 1, 1], [], []>} : vector<8x72xf32>, vector<72x72xf32>, vector<8x72xf32> -> vector<8x72xf32>
    %29 = vector.extract_strided_slice %10 {offsets = [0, 0], sizes = [1, 72], strides = [1, 1]} : vector<8x72xf32> to vector<1x72xf32>
    %cst_24 = arith.constant 0.000000e+00 : f32
    %30 = vector.broadcast %cst_24 : f32 to vector<1x72xf32>
    %31 = arith.cmpf one, %29, %30 : vector<1x72xf32>
    %c0_i32 = arith.constant 0 : i32
    %32 = vector.broadcast %c0_i32 : i32 to vector<8x72xi32>
    %33 = arith.cmpi eq, %0, %32 : vector<8x72xi32>
    %34 = vector.broadcast %31 : vector<1x72xi1> to vector<8x72xi1>
    %35 = arith.andi %34, %33 : vector<8x72xi1>
    %c7_i32 = arith.constant 7 : i32
    %36 = vector.broadcast %c7_i32 : i32 to vector<8x72xi32>
    %37 = arith.cmpi slt, %1, %36 : vector<8x72xi32>
    %38 = arith.andi %35, %37 : vector<8x72xi1>
    %cst_25 = arith.constant -1.000000e+10 : f32
    %39 = vector.broadcast %cst_25 : f32 to vector<8x72xf32>
    %40 = arith.select %38, %39, %28 : vector<8x72xi1>, vector<8x72xf32>
    %c2_i32 = arith.constant 2 : i32
    %41 = vector.broadcast %c2_i32 : i32 to vector<8x72xi32>
    %42 = arith.cmpi slt, %0, %41 : vector<8x72xi32>
    %c7_i32_26 = arith.constant 7 : i32
    %43 = vector.broadcast %c7_i32_26 : i32 to vector<8x72xi32>
    %44 = arith.cmpi slt, %1, %43 : vector<8x72xi32>
    %45 = arith.andi %42, %44 : vector<8x72xi1>
    %cst_27 = arith.constant 0xFF800000 : f32
    %46 = vector.broadcast %cst_27 : f32 to vector<8x72xf32>
    %47 = arith.select %45, %40, %46 : vector<8x72xi1>, vector<8x72xf32>
    %48 = vector.shape_cast %47 : vector<8x72xf32> to vector<1x8x72xf32>
    %cst_28 = arith.constant dense<0xFF800000> : vector<1xf32>
    %49 = vector.multi_reduction <maximumf>, %48, %cst_28 [1, 2] : vector<1x8x72xf32> to vector<1xf32>
    %50 = vector.shape_cast %49 : vector<1xf32> to vector<1x1x1xf32>
    %51 = vector.extract %50[0, 0, 0] : f32 from vector<1x1x1xf32>
    %52 = vector.broadcast %51 : f32 to vector<1x1xf32>
    %c7_i32_29 = arith.constant 7 : i32
    %53 = vector.broadcast %c7_i32_29 : i32 to vector<8x72xi32>
    %54 = arith.muli %0, %53 : vector<8x72xi32>
    %55 = arith.addi %54, %1 : vector<8x72xi32>
    %56 = vector.broadcast %52 : vector<1x1xf32> to vector<8x72xf32>
    %57 = arith.cmpf oeq, %47, %56 : vector<8x72xf32>
    %c2147483647_i32 = arith.constant 2147483647 : i32
    %58 = vector.broadcast %c2147483647_i32 : i32 to vector<8x72xi32>
    %59 = arith.select %57, %55, %58 : vector<8x72xi1>, vector<8x72xi32>
    %60 = vector.shape_cast %59 : vector<8x72xi32> to vector<1x8x72xi32>
    %cst_30 = arith.constant dense<2147483647> : vector<1xi32>
    %61 = vector.multi_reduction <minsi>, %60, %cst_30 [1, 2] : vector<1x8x72xi32> to vector<1xi32>
    %62 = vector.shape_cast %61 : vector<1xi32> to vector<1x1x1xi32>
    %63 = vector.extract %62[0, 0, 0] : i32 from vector<1x1x1xi32>
    %64 = vector.broadcast %63 : i32 to vector<1x1xi32>
    %c0_31 = arith.constant 0 : index
    %c0_32 = arith.constant 0 : index
    %65 = vector.load %arg4[%c0_31, %c0_32] : memref<1x1xi32, #tpu.memory_space<vmem>>, vector<1x1xi32>
    tpu.vector_store %arg4[%c0_31, %c0_32], %64 {strides = array<i32>} : memref<1x1xi32, #tpu.memory_space<vmem>>, vector<1x1xi32>,
    %c0_33 = arith.constant 0 : index
    %c0_34 = arith.constant 0 : index
    %66 = vector.load %arg4[%c0_33, %c0_34] : memref<1x1xi32, #tpu.memory_space<vmem>>, vector<1x1xi32>
    %67 = vector.extract %66[0, 0] : i32 from vector<1x1xi32>
    %c0_35 = arith.constant 0 : index
    %68 = memref.load %arg2[%c0_35] : memref<1xi32, #tpu.memory_space<smem>>
    memref.store %67, %arg2[%c0_35] : memref<1xi32, #tpu.memory_space<smem>>
    return
  }
}

</mosaic_0001>

<llo_original>
// kernel: tpu_custom_call.1
$region0: #{tpu_custom_call.1}
  #allocation0 [shape = 'u32[]', space=smem, size = 0x4, offset = 0x4, fixed_abs, tag = 'smem constant byte address 0x4 - core index']
  #allocation1 [shape = 'u32[72,128]{1,0:T(1,128)}', space=vmem, size = 0x9000, scoped, tag = 'internal scratch']
  #allocation2 [shape = 'f32[8,72]{1,0:T(8,128)}', space=vmem, size = 0x1000, scoped, tag = 'scratch operand']
  #allocation3 [shape = 's32[1,1]{1,0:T(1,128)}', space=vmem, size = 0x200, scoped, tag = 'scratch operand']
  %s0 = inlined_call_operand.hbm [shape: f32[2,42], index: 0, kind: input, shape index: {}]
  %s1 = inlined_call_operand.hbm [shape: f32[4,72,72], index: 1, kind: input, shape index: {}]
  %s2 = inlined_call_operand.hbm [shape: s32[1], index: 2, kind: output, shape index: {}]
  %s3 = sld [smem:[#allocation0]]
  $region26: #{tpu_custom_call.1} parent=0
    _
  %s5 = ssub.s32 1, %s3
  %s6 = scalar_select 0, %s5, %s3
  $region1: #{tpu_custom_call.1} parent=0
    #allocation4 [shape = 'u8[1024]{0}', space=vmem, size = 0x400, scoped, tag = 'input window, operand 0, single buffered']
    #allocation5 [shape = 's32[1]{0}', space=sflag, size = 0x4, scoped, tag = 'scoped memory for tpu_custom_call.1']
    #allocation6 [shape = 's32[1]{0}', space=sflag, size = 0x4, scoped, tag = 'scoped memory for tpu_custom_call.1']
    #allocation7 [shape = 'u8[147456]{0}', space=vmem, size = 0x24000, scoped, tag = 'input window, operand 1, single buffered']
    #allocation8 [shape = 's32[1]{0}', space=sflag, size = 0x4, scoped, tag = 'scoped memory for tpu_custom_call.1']
    #allocation9 [shape = 'u8[512]{0}', space=smem, size = 0x200, scoped, tag = 'output window, operand 0, single buffered']
    %7 = vsyncpa [#allocation5], 0
    %8 = vsyncpa [#allocation8], 0
    %9 = vsyncpa [#allocation6], 0
    // Predicated region
    $region2: #{tpu_custom_call.1} parent=1 // pred_check
      _
    $region3: #{tpu_custom_call.1} parent=1 // pred_check_branch
      %11 = sbr.rel (0) target = $region5
    $region4: #{tpu_custom_call.1} parent=1 // pred_region
      %13 = vsyncadd [#allocation5], 0
      %s15 = sshll.u32 %s0, 4
      %s16 = int_to_ptr.hbm [resolvable:$true] %s15
      %s17 = sshll.u32 [#allocation4], 4
      %s18 = int_to_ptr.vmem [resolvable:$true] %s17
      %20 = dma.hbm_to_vmem [thread:$0]  %s16, 32, %s18, [#allocation5]
    $region5: #{tpu_custom_call.1} parent=1 // pred_fallthru
      _
    // Predicated region
    $region6: #{tpu_custom_call.1} parent=1 // pred_check
      _
    $region7: #{tpu_custom_call.1} parent=1 // pred_check_branch
      %22 = sbr.rel (0) target = $region9
    $region8: #{tpu_custom_call.1} parent=1 // pred_region
      %24 = vsyncadd [#allocation8], 0
      %s25 = sshll.u32 %s1, 4
      %s26 = int_to_ptr.hbm [resolvable:$true] %s25
      %s27 = sshll.u32 [#allocation7], 4
      %s28 = int_to_ptr.vmem [resolvable:$true] %s27
      %33 = dma.hbm_to_vmem [thread:$0]  %s26, 4608, %s28, [#allocation8], 128, 128, 8
    $region9: #{tpu_custom_call.1} parent=1 // pred_fallthru
      _
    // Predicated region
    $region10: #{tpu_custom_call.1} parent=1 // pred_check
      _
    $region11: #{tpu_custom_call.1} parent=1 // pred_check_branch
      %35 = sbr.rel (0) target = $region13
    $region12: #{tpu_custom_call.1} parent=1 // pred_region
      %37 = dma.done [#allocation5], 32
    $region13: #{tpu_custom_call.1} parent=1 // pred_fallthru
      _
    // Predicated region
    $region14: #{tpu_custom_call.1} parent=1 // pred_check
      _
    $region15: #{tpu_custom_call.1} parent=1 // pred_check_branch
      %39 = sbr.rel (0) target = $region17
    $region16: #{tpu_custom_call.1} parent=1 // pred_region
      %41 = dma.done [#allocation8], 4608
    $region17: #{tpu_custom_call.1} parent=1 // pred_fallthru
      _
    %v42 = vlaneseq
    %v43 = vshrl.u32 %v42, 7
    %v44 = vlaneseq
    %v45 = vand.u32 %v44, 127
    %vm46 = vcmp.eq.s32.totalorder %v45, 64
    %v47 = vsel %vm46, 1.0, 0.0
    %vm48 = vcmask 588800
    %49 = vst.msk [vmem:[#allocation2] sm:$0xff] %vm48, %v47
    %v50 = vld [vmem:[#allocation4] sm:$0x3]
    %vm51 = vcmask 336896
    %52 = vst.msk [vmem:[#allocation2] sm:$0x3] %vm51, %v50
    %v53 = vld [vmem:[#allocation2] sm:$0xff]
    %v54 = vld [vmem:[#allocation7] sm:$0xff]
    %v55 = vld [vmem:[#allocation7 + $0x8] sm:$0xff]
    %v56 = vld [vmem:[#allocation7 + $0x10] sm:$0xff]
    %v57 = vld [vmem:[#allocation7 + $0x18] sm:$0xff]
    %v58 = vld [vmem:[#allocation7 + $0x20] sm:$0xff]
    %v59 = vld [vmem:[#allocation7 + $0x28] sm:$0xff]
    %v60 = vld [vmem:[#allocation7 + $0x30] sm:$0xff]
    %v61 = vld [vmem:[#allocation7 + $0x38] sm:$0xff]
    %v62 = vld [vmem:[#allocation7 + $0x40] sm:$0xff]
    %v64 = vsel %vm48, %v53, 0
    %66 = vmatpush.msra.mxu0 0.0
    %67 = vmatpush.msra.mxu0 0.0
    %68 = vmatpush.msra.mxu0 0.0
    %69 = vmatpush.msra.mxu0 0.0
    %70 = vmatpush.msra.mxu0 0.0
    %71 = vmatpush.msra.mxu0 0.0
    %72 = vmatpush.msra.mxu0 0.0
    %73 = vmatpush.msra.mxu0 %v62
    %74 = vmatpush.msra.mxu0 %v61
    %75 = vmatpush.msra.mxu0 %v60
    %76 = vmatpush.msra.mxu0 %v59
    %77 = vmatpush.msra.mxu0 %v58
    %78 = vmatpush.msra.mxu0 %v57
    %79 = vmatpush.msra.mxu0 %v56
    %80 = vmatpush.msra.mxu0 %v55
    %81 = vmatpush.msra.mxu0 %v54
    %82 = vmatmul.f32.gmra.mxu0 %v64
    %v83 = vpop.f32.mrf.mxu0
    %v84 = vadd.f32 0.0, %v83
    %85 = vdwg.mxu0
    %v86 = vmax.f32 %v84, 0.0
    %s87 = scalar_lea.vmem [#allocation7], 72
    %v88 = vld [vmem:[%s87] sm:$0xff]
    %v89 = vld [vmem:[%s87 + $0x8] sm:$0xff]
    %v90 = vld [vmem:[%s87 + $0x10] sm:$0xff]
    %v91 = vld [vmem:[%s87 + $0x18] sm:$0xff]
    %v92 = vld [vmem:[%s87 + $0x20] sm:$0xff]
    %v93 = vld [vmem:[%s87 + $0x28] sm:$0xff]
    %v94 = vld [vmem:[%s87 + $0x30] sm:$0xff]
    %v95 = vld [vmem:[%s87 + $0x38] sm:$0xff]
    %v96 = vld [vmem:[%s87 + $0x40] sm:$0xff]
    %v98 = vsel %vm48, %v86, 0
    %100 = vmatpush.msra.mxu0 0.0
    %101 = vmatpush.msra.mxu0 0.0
    %102 = vmatpush.msra.mxu0 0.0
    %103 = vmatpush.msra.mxu0 0.0
    %104 = vmatpush.msra.mxu0 0.0
    %105 = vmatpush.msra.mxu0 0.0
    %106 = vmatpush.msra.mxu0 0.0
    %107 = vmatpush.msra.mxu0 %v96
    %108 = vmatpush.msra.mxu0 %v95
    %109 = vmatpush.msra.mxu0 %v94
    %110 = vmatpush.msra.mxu0 %v93
    %111 = vmatpush.msra.mxu0 %v92
    %112 = vmatpush.msra.mxu0 %v91
    %113 = vmatpush.msra.mxu0 %v90
    %114 = vmatpush.msra.mxu0 %v89
    %115 = vmatpush.msra.mxu0 %v88
    %116 = vmatmul.f32.gmra.mxu0 %v98
    %v117 = vpop.f32.mrf.mxu0
    %v118 = vadd.f32 0.0, %v117
    %119 = vdwg.mxu0
    %v120 = vmax.f32 %v118, 0.0
    %s121 = scalar_lea.vmem [#allocation7], 144
    %v122 = vld [vmem:[%s121] sm:$0xff]
    %v123 = vld [vmem:[%s121 + $0x8] sm:$0xff]
    %v124 = vld [vmem:[%s121 + $0x10] sm:$0xff]
    %v125 = vld [vmem:[%s121 + $0x18] sm:$0xff]
    %v126 = vld [vmem:[%s121 + $0x20] sm:$0xff]
    %v127 = vld [vmem:[%s121 + $0x28] sm:$0xff]
    %v128 = vld [vmem:[%s121 + $0x30] sm:$0xff]
    %v129 = vld [vmem:[%s121 + $0x38] sm:$0xff]
    %v130 = vld [vmem:[%s121 + $0x40] sm:$0xff]
    %v132 = vsel %vm48, %v120, 0
    %134 = vmatpush.msra.mxu0 0.0
    %135 = vmatpush.msra.mxu0 0.0
    %136 = vmatpush.msra.mxu0 0.0
    %137 = vmatpush.msra.mxu0 0.0
    %138 = vmatpush.msra.mxu0 0.0
    %139 = vmatpush.msra.mxu0 0.0
    %140 = vmatpush.msra.mxu0 0.0
    %141 = vmatpush.msra.mxu0 %v130
    %142 = vmatpush.msra.mxu0 %v129
    %143 = vmatpush.msra.mxu0 %v128
    %144 = vmatpush.msra.mxu0 %v127
    %145 = vmatpush.msra.mxu0 %v126
    %146 = vmatpush.msra.mxu0 %v125
    %147 = vmatpush.msra.mxu0 %v124
    %148 = vmatpush.msra.mxu0 %v123
    %149 = vmatpush.msra.mxu0 %v122
    %150 = vmatmul.f32.gmra.mxu0 %v132
    %v151 = vpop.f32.mrf.mxu0
    %v152 = vadd.f32 0.0, %v151
    %153 = vdwg.mxu0
    %v154 = vmax.f32 %v152, 0.0
    %s155 = scalar_lea.vmem [#allocation7], 216
    %v156 = vld [vmem:[%s155] sm:$0xff]
    %v157 = vld [vmem:[%s155 + $0x8] sm:$0xff]
    %v158 = vld [vmem:[%s155 + $0x10] sm:$0xff]
    %v159 = vld [vmem:[%s155 + $0x18] sm:$0xff]
    %v160 = vld [vmem:[%s155 + $0x20] sm:$0xff]
    %v161 = vld [vmem:[%s155 + $0x28] sm:$0xff]
    %v162 = vld [vmem:[%s155 + $0x30] sm:$0xff]
    %v163 = vld [vmem:[%s155 + $0x38] sm:$0xff]
    %v164 = vld [vmem:[%s155 + $0x40] sm:$0xff]
    %v166 = vsel %vm48, %v154, 0
    %168 = vmatpush.msra.mxu0 0.0
    %169 = vmatpush.msra.mxu0 0.0
    %170 = vmatpush.msra.mxu0 0.0
    %171 = vmatpush.msra.mxu0 0.0
    %172 = vmatpush.msra.mxu0 0.0
    %173 = vmatpush.msra.mxu0 0.0
    %174 = vmatpush.msra.mxu0 0.0
    %175 = vmatpush.msra.mxu0 %v164
    %176 = vmatpush.msra.mxu0 %v163
    %177 = vmatpush.msra.mxu0 %v162
    %178 = vmatpush.msra.mxu0 %v161
    %179 = vmatpush.msra.mxu0 %v160
    %180 = vmatpush.msra.mxu0 %v159
    %181 = vmatpush.msra.mxu0 %v158
    %182 = vmatpush.msra.mxu0 %v157
    %183 = vmatpush.msra.mxu0 %v156
    %184 = vmatmul.f32.gmra.mxu0 %v166
    %v185 = vpop.f32.mrf.mxu0
    %v186 = vadd.f32 0.0, %v185
    %187 = vdwg.mxu0
    %vm188 = vcmp.ne.f32.partialorder %v53, 0.0
    %vm189 = vcmp.eq.s32.totalorder %v43, 0
    %v190 = vsel %vm188, 1, 0
    %v191 = vperm.slane %v190, 0
    %vm192 = vcmp.eq.s32.totalorder %v191, 1
    %vm193 = vmand %vm192, %vm189
    %vm194 = vcmp.lt.s32.totalorder %v45, 7
    %vm195 = vmand %vm193, %vm194
    %v196 = vsel %vm195, -1e+10, %v186
    %vm197 = vcmp.lt.s32.totalorder %v43, 2
    %vm198 = vmand %vm197, %vm194
    %v199 = vsel %vm198, %v196, -inf
    %v200 = vsel %vm48, %v199, -inf
    %201 = vmax.xlane.f32.xlu0 %v200
    %v202 = vpop.xlane.xlu0 %201
    %v203 = vrot.slane %v202, 4
    %v204 = vmax.f32 %v202, %v203
    %v205 = vrot.slane %v204, 2
    %v206 = vmax.f32 %v204, %v205
    %v207 = vrot.slane %v206, 1
    %v208 = vmax.f32 %v206, %v207
    %s209 = vtos %v208
    %v210 = vmul.u32 %v43, 7
    %v211 = vadd.s32 %v210, %v45
    %v212 = vstv %s209
    %vm213 = vcmp.eq.f32.partialorder %v199, %v212
    %v214 = vsel %vm213, %v211, 2147483647
    %v215 = vsel %vm48, %v214, 2147483647
    %v216 = vand.u32 %v215, 65535
    %v217 = vshra.s32 %v215, 16
    %v218 = vcvt.s32.f32 %v216
    %v219 = vcvt.s32.f32 %v217
    %220 = vmin.xlane.f32.xlu0 %v219
    %v221 = vpop.xlane.xlu0 %220
    %vm222 = vcmp.eq.f32.partialorder %v219, %v221
    %v223 = vsel %vm222, %v218, inf
    %224 = vmin.xlane.f32.xlu0 %v223
    %v225 = vpop.xlane.xlu0 %224
    %v226 = vcvt.f32.s32 %v225
    %v227 = vcvt.f32.s32 %v221
    %v228 = vshll.u32 %v227, 16
    %v229 = vadd.s32 %v228, %v226
    %v230 = vrot.slane %v229, 4
    %vm231 = vcmp.lt.s32.totalorder %v229, %v230
    %v232 = vsel %vm231, %v229, %v230
    %v233 = vrot.slane %v232, 2
    %vm234 = vcmp.lt.s32.totalorder %v232, %v233
    %v235 = vsel %vm234, %v232, %v233
    %v236 = vrot.slane %v235, 1
    %vm237 = vcmp.lt.s32.totalorder %v235, %v236
    %v238 = vsel %vm237, %v235, %v236
    %s239 = vtos %v238
    %v240 = vstv %s239
    %vm241 = vcmask 0
    %242 = vst.msk [vmem:[#allocation3] sm:$0x1] %vm241, %v240
    %v243 = vld [vmem:[#allocation3] sm:$0x1]
    %s244 = vtos %v243
    %s245 = scalar_lea.smem [#allocation9], 0
    %246 = sst [smem:[%s245]] %s244
    // Predicated region
    $region18: #{tpu_custom_call.1} parent=1 // pred_check
      _
    $region19: #{tpu_custom_call.1} parent=1 // pred_check_branch
      %248 = sbr.rel (0) target = $region21
    $region20: #{tpu_custom_call.1} parent=1 // pred_region
      %250 = vsyncadd [#allocation6], 0
      %s252 = sshll.u32 %s2, 4
      %s253 = int_to_ptr.hbm [resolvable:$true] %s252
      %255 = dma.smem_to_hbm [#allocation9], 16, %s253, [#allocation6]
    $region21: #{tpu_custom_call.1} parent=1 // pred_fallthru
      _
    // Predicated region
    $region22: #{tpu_custom_call.1} parent=1 // pred_check
      _
    $region23: #{tpu_custom_call.1} parent=1 // pred_check_branch
      %257 = sbr.rel (0) target = $region25
    $region24: #{tpu_custom_call.1} parent=1 // pred_region
      %259 = dma.done [#allocation6], 16
    $region25: #{tpu_custom_call.1} parent=1 // pred_fallthru
      _
    %260 = sfence
    %261 = vsyncpa [#allocation5], 1
    %262 = vsyncpa [#allocation8], 1
    %263 = vsyncpa [#allocation6], 1

</llo_original>
